<compile_context>
chip_gen: v7x
topology: tpu7x:2x2x1
jax: 0.10.0
libtpu: 0.0.40
codegen_flags: <defaults>
</compile_context>

<pallas_src>
import jax
import jax.numpy as jnp
from jax.experimental import pallas as pl
from jax.experimental.pallas import tpu as pltpu


# ----------------------------------------------------------------------------
# Kernels
# ----------------------------------------------------------------------------
def _skinny_matmul_kernel(x_ref, w_ref, o_ref):
    """x resident (M, K), w streamed (K, tn), o (M, tn). No reduction axis."""
    o_ref[...] = jnp.dot(
        x_ref[...], w_ref[...], preferred_element_type=jnp.float32
    ).astype(o_ref.dtype)


def _matmul_kernel_f32out(x_ref, w_ref, o_ref):
    """Tiled y = x @ w_kn, accumulating directly into the resident f32 output.

    Grid = (M/tm, N/tn, K/tk); K (axis 2) is the reduction axis, the output
    BlockSpec is invariant in k so o_ref stays resident across it.
    """
    @pl.when(pl.program_id(2) == 0)
    def _():
        o_ref[...] = jnp.zeros_like(o_ref)

    o_ref[...] += jnp.dot(
        x_ref[...], w_ref[...], preferred_element_type=jnp.float32
    )


def _matmul_kernel_acc(x_ref, w_ref, o_ref, acc_ref):
    """Tiled y = x @ w_kn with an f32 scratch accumulator (non-f32 outputs)."""
    @pl.when(pl.program_id(2) == 0)
    def _():
        acc_ref[...] = jnp.zeros_like(acc_ref)

    acc_ref[...] += jnp.dot(
        x_ref[...], w_ref[...], preferred_element_type=jnp.float32
    )

    @pl.when(pl.program_id(2) == pl.num_programs(2) - 1)
    def _():
        o_ref[...] = acc_ref[...].astype(o_ref.dtype)


# ----------------------------------------------------------------------------
# Helpers
# ----------------------------------------------------------------------------
def _round_up(x: int, m: int) -> int:
    return (x + m - 1) // m * m


def _vmem_capacity_bytes() -> int:
    """Physical VMEM per TensorCore; conservative 64 MiB fallback (v7x)."""
    try:
        cap = int(pltpu.get_tpu_info().vmem_capacity_bytes)
        if cap > 0:
            return cap
    except Exception:
        pass
    return 64 << 20


def _pick_tk(K: int, tk_req: int):
    """Pick tk <= tk_req that divides K (prefer 256-aligned, then 128).

    Returns (tk, Kp) where Kp == K unless no aligned divisor exists, in which
    case Kp is K rounded up to tk (caller must zero-pad K, exact for matmul).
    """
    if K <= tk_req:
        return K, K
    tk_max = max(128, (tk_req // 128) * 128)
    for align in (256, 128):
        t = (tk_max // align) * align
        while t >= align:
            if K % t == 0:
                return t, K
            t -= align
    return tk_max, _round_up(K, tk_max)


# ----------------------------------------------------------------------------
# Wrapper
# ----------------------------------------------------------------------------
def linear_no_bias(x: jax.Array, w_kn: jax.Array, *, tm: int | None = None,
                   tn: int | None = None, tk: int | None = None) -> jax.Array:
    """y = x @ w_kn  (== x @ weight.T for PyTorch weight of shape [N, K]).

    x:    [M, K]  (batch, in_features)
    w_kn: [K, N]  pre-transposed weight (transpose the static parameter once
                  at model-construction time, NOT per forward call).
    returns: [M, N] in x.dtype.
    """
    M, K = x.shape
    K2, N = w_kn.shape
    assert K == K2, "in_features mismatch between input and weight"
    out_dtype = x.dtype
    itemsize = jnp.dtype(x.dtype).itemsize
    w_itemsize = jnp.dtype(w_kn.dtype).itemsize
    out_itemsize = jnp.dtype(out_dtype).itemsize

    vmem_cap = _vmem_capacity_bytes()
    big_vmem = vmem_cap >= (100 << 20)           # v5e / v6e (128 MiB parts)
    vmem_cap_limit = (96 << 20) if big_vmem else (48 << 20)

    cost = pl.CostEstimate(
        flops=2 * M * N * K,
        transcendentals=0,
        bytes_accessed=(M * K + K * N) * itemsize + M * N * out_itemsize,
    )

    # ---- Skinny-LHS path (typical inference batches): x resident in VMEM, ----
    # ---- 1-D grid over N, no reduction axis, no accumulator.              ----
    x_bytes = M * K * itemsize
    if M <= 256 and x_bytes <= vmem_cap // 8:
        tn_s = tn if tn is not None else 512
        if N <= tn_s:
            tn_s = N
        else:
            tn_s = max(128, (tn_s // 128) * 128)
            while tn_s > 128:
                fp = (x_bytes + 2 * K * tn_s * w_itemsize
                      + 2 * M * tn_s * out_itemsize)
                if fp <= vmem_cap_limit // 2:
                    break
                tn_s = max(128, ((tn_s // 2) // 128) * 128)
        footprint = (x_bytes + 2 * K * tn_s * w_itemsize
                     + 2 * M * tn_s * out_itemsize)
        vmem_limit = min(vmem_cap_limit, max(16 << 20, footprint * 2))
        # If a trace ever shows exposed w-tile DMA here, add
        # pipeline_mode=pl.Buffered(3) to the w BlockSpec.
        return pl.pallas_call(
            _skinny_matmul_kernel,
            out_shape=jax.ShapeDtypeStruct((M, N), out_dtype),
            grid_spec=pltpu.PrefetchScalarGridSpec(
                num_scalar_prefetch=0,
                grid=(pl.cdiv(N, tn_s),),
                in_specs=[
                    pl.BlockSpec((M, K), lambda j: (0, 0)),      # x resident
                    pl.BlockSpec((K, tn_s), lambda j: (0, j)),   # w streamed
                ],
                out_specs=pl.BlockSpec((M, tn_s), lambda j: (0, j)),
            ),
            compiler_params=pltpu.CompilerParams(
                dimension_semantics=("parallel",),
                vmem_limit_bytes=vmem_limit,
            ),
            cost_estimate=cost,
        )(x, w_kn)

    # ---- Tiled path: 3-D grid (M/tm, N/tn, K/tk), K innermost reduction. ----
    if big_vmem:
        tm_d, tn_d, tk_d = 512, 1024, 1024
    else:
        tm_d, tn_d, tk_d = 256, 512, 1024
    tm = tm if tm is not None else tm_d
    tn = tn if tn is not None else tn_d
    tk = tk if tk is not None else tk_d

    sub = max(8, 32 // itemsize)                 # min sublane tile for dtype
    tm = M if M <= tm else max(sub, (tm // sub) * sub)
    grid_m = pl.cdiv(M, tm)

    # Keep both v7x TensorCores fed: if the M axis collapsed to one block,
    # make the N axis yield at least two "parallel" blocks.
    if grid_m == 1 and N > 512:
        tn = min(tn, max(256, _round_up(pl.cdiv(N, 2), 256)))
    tn = N if N <= tn else max(128, (tn // 128) * 128)

    tk, Kp = _pick_tk(K, tk)
    if Kp != K:
        # Fallback only (K with no 128-aligned divisor); zero pad is exact.
        x = jnp.pad(x, ((0, 0), (0, Kp - K)))
        w_kn = jnp.pad(w_kn, ((0, Kp - K), (0, 0)))

    grid = (grid_m, pl.cdiv(N, tn), Kp // tk)

    f32_out = jnp.dtype(out_dtype) == jnp.dtype(jnp.float32)
    if f32_out:
        kernel = _matmul_kernel_f32out
        scratch_shapes = []
        acc_bytes = 0
    else:
        kernel = _matmul_kernel_acc
        scratch_shapes = [pltpu.VMEM((tm, tn), jnp.float32)]
        acc_bytes = tm * tn * 4

    footprint = (2 * (tm * tk * itemsize + tk * tn * w_itemsize
                      + tm * tn * out_itemsize) + acc_bytes)
    vmem_limit = min(vmem_cap_limit, max(32 << 20, footprint * 3 // 2))

    return pl.pallas_call(
        kernel,
        out_shape=jax.ShapeDtypeStruct((M, N), out_dtype),
        grid_spec=pltpu.PrefetchScalarGridSpec(
            num_scalar_prefetch=0,
            grid=grid,
            in_specs=[
                pl.BlockSpec((tm, tk), lambda i, j, k: (i, k)),  # x tile
                pl.BlockSpec((tk, tn), lambda i, j, k: (k, j)),  # w tile [K,N]
            ],
            out_specs=pl.BlockSpec((tm, tn), lambda i, j, k: (i, j)),
            scratch_shapes=scratch_shapes,
        ),
        compiler_params=pltpu.CompilerParams(
            dimension_semantics=("parallel", "parallel", "arbitrary"),
            vmem_limit_bytes=vmem_limit,
        ),
        cost_estimate=cost,
    )(x, w_kn)


# ----------------------------------------------------------------------------
# Module wrapper (matches LinearModel: square weight initialized to identity)
# ----------------------------------------------------------------------------
class LinearModelPallas:
    """y = embed @ W^T, no bias; W = eye(dim) as in the PyTorch module."""

    def __init__(self, dim: int, dtype=jnp.float32):
        self.in_features = dim
        self.out_features = dim
        w_nk = jnp.eye(dim, dim, dtype=dtype)        # PyTorch [out, in] layout
        # Pre-transpose the static parameter ONCE to the MXU-native [K, N]
        # layout; amortized over every forward call.
        self.w_kn = jnp.asarray(w_nk.T)

    def __call__(self, embed: jax.Array) -> jax.Array:
        return linear_no_bias(embed, self.w_kn)


# ----------------------------------------------------------------------------
# Self-test
# ----------------------------------------------------------------------------
if __name__ == "__main__":
    key = jax.random.PRNGKey(0)

    # 1) The module's shipped configuration: dim=128, W=eye -> identity map.
    #    Hits the skinny-LHS (resident x, 1-D grid over N) path.
    dim, batch = 128, 8
    embed = jax.random.normal(key, (batch, dim), dtype=jnp.float32)
    model = LinearModelPallas(dim)
    out = jax.block_until_ready(model(embed))
    assert out.shape == (batch, dim)
    assert jnp.allclose(out, embed, atol=1e-5)

    k1, k2, k3, k4 = jax.random.split(key, 4)

    # 2) Skinny path with a random pre-transposed weight and multiple N blocks.
    xs = jax.random.normal(k1, (16, 128), dtype=jnp.float32)
    ws = jax.random.normal(k2, (128, 256), dtype=jnp.float32)   # [K, N]
    outs = jax.block_until_ready(linear_no_bias(xs, ws, tn=128))
    assert outs.shape == (16, 256)
    assert jnp.allclose(outs, xs @ ws, rtol=1e-5, atol=1e-3)

    # 3) Tiled grid path with non-divisible M/N edge blocks (no pad/slice),
    #    K reduction axis resident-accumulated in the f32 output.
    xt = jax.random.normal(k3, (300, 256), dtype=jnp.float32)
    wt = jax.random.normal(k4, (256, 384), dtype=jnp.float32)   # [K, N]
    outt = jax.block_until_ready(
        linear_no_bias(xt, wt, tm=128, tn=128, tk=128))         # grid=(3,3,2)
    assert outt.shape == (300, 384)
    assert jnp.allclose(outt, xt @ wt, rtol=1e-5, atol=1e-3)

    print("KERNEL_OK")
</pallas_src>

<mosaic_0001>
module attributes {stable_mosaic.version = 11 : i64} {
  func.func @_skinny_matmul_kernel(%arg0: i32, %arg1: memref<8x128xf32, #tpu.memory_space<vmem>>, %arg2: memref<128x128xf32, #tpu.memory_space<vmem>>, %arg3: memref<8x128xf32, #tpu.memory_space<vmem>>) attributes {dimension_semantics = [#tpu.dimension_semantics<parallel>], iteration_bounds = array<i64: 1>, scalar_prefetch = 0 : i64, scratch_operands = 0 : i64, tpu.core_type = #tpu.core_type<tc>, window_params = [{pipeline_mode = #tpu.pipeline_mode<synchronous>, transform_indices = @transform_0, window_bounds = array<i64: 8, 128>}, {transform_indices = @transform_1, window_bounds = array<i64: 128, 128>}, {transform_indices = @transform_2, window_bounds = array<i64: 8, 128>}]} {
    %c0 = arith.constant 0 : index
    %c0_0 = arith.constant 0 : index
    %0 = vector.load %arg1[%c0, %c0_0] : memref<8x128xf32, #tpu.memory_space<vmem>>, vector<8x128xf32>
    %c0_1 = arith.constant 0 : index
    %c0_2 = arith.constant 0 : index
    %1 = vector.load %arg2[%c0_1, %c0_2] : memref<128x128xf32, #tpu.memory_space<vmem>>, vector<128x128xf32>
    %cst = arith.constant dense<0.000000e+00> : vector<8x128xf32>
    %2 = tpu.matmul %0, %1, %cst {dimension_numbers = #tpu.dot_dimension_numbers<[1], [0], [0], [1], [0, 0, 1, 1], [], []>} : vector<8x128xf32>, vector<128x128xf32>, vector<8x128xf32> -> vector<8x128xf32>
    %c0_3 = arith.constant 0 : index
    %c0_4 = arith.constant 0 : index
    %3 = vector.load %arg3[%c0_3, %c0_4] : memref<8x128xf32, #tpu.memory_space<vmem>>, vector<8x128xf32>
    tpu.vector_store %arg3[%c0_3, %c0_4], %2 {strides = array<i32>} : memref<8x128xf32, #tpu.memory_space<vmem>>, vector<8x128xf32>,
    return
  }
  func.func @transform_0(%arg0: i32) -> (i32, i32) {
    %c0_i32 = arith.constant 0 : i32
    %c0_i32_0 = arith.constant 0 : i32
    %c0_i32_1 = arith.constant 0 : i32
    return %c0_i32, %c0_i32_0 : i32, i32
  }
  func.func @transform_1(%arg0: i32) -> (i32, i32) {
    %c0_i32 = arith.constant 0 : i32
    %c0_i32_0 = arith.constant 0 : i32
    return %c0_i32, %arg0 : i32, i32
  }
  func.func @transform_2(%arg0: i32) -> (i32, i32) {
    %c0_i32 = arith.constant 0 : i32
    %c0_i32_0 = arith.constant 0 : i32
    return %c0_i32, %arg0 : i32, i32
  }
}

</mosaic_0001>

<llo_original>
// kernel: tpu_custom_call.1
$region0: #{tpu_custom_call.1}
  #allocation0 [shape = 'u32[]', space=smem, size = 0x4, offset = 0x4, fixed_abs, tag = 'smem constant byte address 0x4 - core index']
  #allocation1 [shape = 'u32[144,128]{1,0:T(1,128)}', space=vmem, size = 0x12000, scoped, tag = 'internal scratch']
  %s0 = inlined_call_operand.hbm [shape: f32[8,128], index: 0, kind: input, shape index: {}]
  %s1 = inlined_call_operand.hbm [shape: f32[128,128], index: 1, kind: input, shape index: {}]
  %s2 = inlined_call_operand.hbm [shape: f32[8,128], index: 2, kind: output, shape index: {}]
  %s3 = sld [smem:[#allocation0]]
  $region26: #{tpu_custom_call.1} parent=0
    _
  %s5 = ssub.s32 1, %s3
  %s6 = scalar_select 0, %s5, %s3
  $region1: #{tpu_custom_call.1} parent=0
    #allocation2 [shape = 'u8[4096]{0}', space=vmem, size = 0x1000, scoped, tag = 'input window, operand 0, single buffered']
    #allocation3 [shape = 's32[1]{0}', space=sflag, size = 0x4, scoped, tag = 'scoped memory for tpu_custom_call.1']
    #allocation4 [shape = 's32[1]{0}', space=sflag, size = 0x4, scoped, tag = 'scoped memory for tpu_custom_call.1']
    #allocation5 [shape = 'u8[65536]{0}', space=vmem, size = 0x10000, scoped, tag = 'input window, operand 1, single buffered']
    #allocation6 [shape = 's32[1]{0}', space=sflag, size = 0x4, scoped, tag = 'scoped memory for tpu_custom_call.1']
    #allocation7 [shape = 'u8[4096]{0}', space=vmem, size = 0x1000, scoped, tag = 'output window, operand 0, single buffered']
    %7 = vsyncpa [#allocation3], 0
    %8 = vsyncpa [#allocation6], 0
    %9 = vsyncpa [#allocation4], 0
    // Predicated region
    $region2: #{tpu_custom_call.1} parent=1 // pred_check
      _
    $region3: #{tpu_custom_call.1} parent=1 // pred_check_branch
      %11 = sbr.rel (0) target = $region5
    $region4: #{tpu_custom_call.1} parent=1 // pred_region
      %s13 = ssub.s32 128, 128
      %14 = vsyncadd [#allocation3], %s13
      %s16 = sshll.u32 [#allocation2], 4
      %s17 = int_to_ptr.vmem [resolvable:$true] %s16
      %19 = dma.hbm_to_vmem [thread:$0]  %s0, 128, %s17, [#allocation3]
    $region5: #{tpu_custom_call.1} parent=1 // pred_fallthru
      _
    // Predicated region
    $region6: #{tpu_custom_call.1} parent=1 // pred_check
      _
    $region7: #{tpu_custom_call.1} parent=1 // pred_check_branch
      %21 = sbr.rel (0) target = $region9
    $region8: #{tpu_custom_call.1} parent=1 // pred_region
      %s23 = ssub.s32 2048, 2048
      %24 = vsyncadd [#allocation6], %s23
      %s25 = sshll.u32 [#allocation5], 4
      %s26 = int_to_ptr.vmem [resolvable:$true] %s25
      %31 = dma.hbm_to_vmem [thread:$0]  %s1, 2048, %s26, [#allocation6], 128, 128, 8
    $region9: #{tpu_custom_call.1} parent=1 // pred_fallthru
      _
    // Predicated region
    $region10: #{tpu_custom_call.1} parent=1 // pred_check
      _
    $region11: #{tpu_custom_call.1} parent=1 // pred_check_branch
      %33 = sbr.rel (0) target = $region13
    $region12: #{tpu_custom_call.1} parent=1 // pred_region
      %34 = dma.done [#allocation3], 128
    $region13: #{tpu_custom_call.1} parent=1 // pred_fallthru
      _
    // Predicated region
    $region14: #{tpu_custom_call.1} parent=1 // pred_check
      _
    $region15: #{tpu_custom_call.1} parent=1 // pred_check_branch
      %36 = sbr.rel (0) target = $region17
    $region16: #{tpu_custom_call.1} parent=1 // pred_region
      %37 = dma.done [#allocation6], 2048
    $region17: #{tpu_custom_call.1} parent=1 // pred_fallthru
      _
    %v38 = vld [vmem:[#allocation2] sm:$0xff]
    %v39 = vld [vmem:[#allocation5] sm:$0xff]
    %v40 = vld [vmem:[#allocation5 + $0x8] sm:$0xff]
    %v41 = vld [vmem:[#allocation5 + $0x10] sm:$0xff]
    %v42 = vld [vmem:[#allocation5 + $0x18] sm:$0xff]
    %v43 = vld [vmem:[#allocation5 + $0x20] sm:$0xff]
    %v44 = vld [vmem:[#allocation5 + $0x28] sm:$0xff]
    %v45 = vld [vmem:[#allocation5 + $0x30] sm:$0xff]
    %v46 = vld [vmem:[#allocation5 + $0x38] sm:$0xff]
    %v47 = vld [vmem:[#allocation5 + $0x40] sm:$0xff]
    %v48 = vld [vmem:[#allocation5 + $0x48] sm:$0xff]
    %v49 = vld [vmem:[#allocation5 + $0x50] sm:$0xff]
    %v50 = vld [vmem:[#allocation5 + $0x58] sm:$0xff]
    %v51 = vld [vmem:[#allocation5 + $0x60] sm:$0xff]
    %v52 = vld [vmem:[#allocation5 + $0x68] sm:$0xff]
    %v53 = vld [vmem:[#allocation5 + $0x70] sm:$0xff]
    %v54 = vld [vmem:[#allocation5 + $0x78] sm:$0xff]
    %55 = vmatprep.subr.mxu0 0.0
    %56 = vmatpush1.msra.mxu0 %v39
    %57 = vmatprep.subr.mxu0 0.0
    %58 = vmatpush1.msra.mxu0 %v40
    %59 = vmatprep.subr.mxu0 0.0
    %60 = vmatpush1.msra.mxu0 %v41
    %61 = vmatprep.subr.mxu0 0.0
    %62 = vmatpush1.msra.mxu0 %v42
    %63 = vmatprep.subr.mxu0 0.0
    %64 = vmatpush1.msra.mxu0 %v43
    %65 = vmatprep.subr.mxu0 0.0
    %66 = vmatpush1.msra.mxu0 %v44
    %67 = vmatprep.subr.mxu0 0.0
    %68 = vmatpush1.msra.mxu0 %v45
    %69 = vmatprep.subr.mxu0 0.0
    %70 = vmatpush1.msra.mxu0 %v46
    %71 = vmatprep.subr.mxu0 0.0
    %72 = vmatpush1.msra.mxu0 %v47
    %73 = vmatprep.subr.mxu0 0.0
    %74 = vmatpush1.msra.mxu0 %v48
    %75 = vmatprep.subr.mxu0 0.0
    %76 = vmatpush1.msra.mxu0 %v49
    %77 = vmatprep.subr.mxu0 0.0
    %78 = vmatpush1.msra.mxu0 %v50
    %79 = vmatprep.subr.mxu0 0.0
    %80 = vmatpush1.msra.mxu0 %v51
    %81 = vmatprep.subr.mxu0 0.0
    %82 = vmatpush1.msra.mxu0 %v52
    %83 = vmatprep.subr.mxu0 0.0
    %84 = vmatpush1.msra.mxu0 %v53
    %85 = vmatprep.subr.mxu0 0.0
    %86 = vmatpush1.msra.mxu0 %v54
    %87 = vmatprep.subr.mxu0 0.0
    %88 = vmatpush1.msra.mxu0 0.0
    %89 = vmatprep.subr.mxu0 0.0
    %90 = vmatpush1.msra.mxu0 0.0
    %91 = vmatprep.subr.mxu0 0.0
    %92 = vmatpush1.msra.mxu0 0.0
    %93 = vmatprep.subr.mxu0 0.0
    %94 = vmatpush1.msra.mxu0 0.0
    %95 = vmatprep.subr.mxu0 0.0
    %96 = vmatpush1.msra.mxu0 0.0
    %97 = vmatprep.subr.mxu0 0.0
    %98 = vmatpush1.msra.mxu0 0.0
    %99 = vmatprep.subr.mxu0 0.0
    %100 = vmatpush1.msra.mxu0 0.0
    %101 = vmatprep.subr.mxu0 0.0
    %102 = vmatpush1.msra.mxu0 0.0
    %103 = vmatprep.subr.mxu0 0.0
    %104 = vmatpush1.msra.mxu0 0.0
    %105 = vmatprep.subr.mxu0 0.0
    %106 = vmatpush1.msra.mxu0 0.0
    %107 = vmatprep.subr.mxu0 0.0
    %108 = vmatpush1.msra.mxu0 0.0
    %109 = vmatprep.subr.mxu0 0.0
    %110 = vmatpush1.msra.mxu0 0.0
    %111 = vmatprep.subr.mxu0 0.0
    %112 = vmatpush1.msra.mxu0 0.0
    %113 = vmatprep.subr.mxu0 0.0
    %114 = vmatpush1.msra.mxu0 0.0
    %115 = vmatprep.subr.mxu0 0.0
    %116 = vmatpush1.msra.mxu0 0.0
    %117 = vmatprep.subr.mxu0 0.0
    %118 = vmatpush1.msra.mxu0 0.0
    %119 = vmatprep.mubr.f32.mxu0 0.0
    %120 = vmatmul.mubr.f32.gmra.mrb[0].mxu0 %v38
    %v121 = vpop.f32.mrb[0].mxu0
    %v122 = vadd.f32 0.0, %v121
    %v123 = vpop.f32.mrb[0].mxu0
    %124 = vdwg.mxu0
    %125 = vst [vmem:[#allocation7] sm:$0xff] %v122
    // Predicated region
    $region18: #{tpu_custom_call.1} parent=1 // pred_check
      _
    $region19: #{tpu_custom_call.1} parent=1 // pred_check_branch
      %127 = sbr.rel (0) target = $region21
    $region20: #{tpu_custom_call.1} parent=1 // pred_region
      %s129 = ssub.s32 128, 128
      %130 = vsyncadd [#allocation4], %s129
      %s132 = sshll.u32 [#allocation7], 4
      %s133 = int_to_ptr.vmem [resolvable:$true] %s132
      %135 = dma.vmem_to_hbm [thread:$0]  %s133, 128, %s2, [#allocation4]
    $region21: #{tpu_custom_call.1} parent=1 // pred_fallthru
      _
    // Predicated region
    $region22: #{tpu_custom_call.1} parent=1 // pred_check
      _
    $region23: #{tpu_custom_call.1} parent=1 // pred_check_branch
      %137 = sbr.rel (0) target = $region25
    $region24: #{tpu_custom_call.1} parent=1 // pred_region
      %138 = dma.done [#allocation4], 128
    $region25: #{tpu_custom_call.1} parent=1 // pred_fallthru
      _
    %139 = vsyncpa [#allocation3], 1
    %140 = vsyncpa [#allocation6], 1
    %141 = vsyncpa [#allocation4], 1

</llo_original>
